<compile_context>
chip_gen: v6e
topology: v6e:2x2x1
jax: 0.10.0
libtpu: 0.0.40
codegen_flags: <defaults>
</compile_context>

<pallas_src>
import functools

import jax
import jax.numpy as jnp
from jax import lax
from jax.experimental import pallas as pl
from jax.experimental.pallas import tpu as pltpu

_NEG_SENTINEL = -1e30


def _warp_kernel(scores_p_ref, scores_n_ref, target_p_ref, target_n_ref,
                 samp_ref, rw2_ref, loss_ref, lmat_ref, acc_ref, *, alpha):
    ni = pl.program_id(1)

    # ---- once per batch block (first n-tile): per-positive rank weights ----
    @pl.when(ni == 0)
    def _init():
        scores = scores_p_ref[...]                       # (BB, L) f32
        target = target_p_ref[...]                       # (BB, L) int32 {0,1}
        _, l = scores.shape
        pos = target > 0
        num_pos = jnp.sum(pos.astype(jnp.float32), axis=1, keepdims=True)
        valid = jnp.logical_and(num_pos > 0.0, num_pos < float(l))   # (BB, 1)

        n_kc = samp_ref.shape[0]

        def k_chunk(c, best):
            # alpha folded at (BB, KC) cost; no (BB, KC, L) broadcast add.
            t = samp_ref[c] + alpha                      # (BB, KC)
            w = rw2_ref[c]                               # (1, KC), non-increasing
            margin = t[:, :, None] > scores[:, None, :]  # (BB, KC, L); L on lanes
            cand = jnp.where(margin, w[:, :, None], 0.0)
            # rw2 non-increasing -> running max selects the FIRST violator.
            return jnp.maximum(best, jnp.max(cand, axis=1))

        label_rank = lax.fori_loop(0, n_kc, k_chunk, jnp.zeros_like(scores))
        lmat_ref[...] = jnp.where(jnp.logical_and(pos, valid), label_rank, 0.0)
        acc_ref[...] = jnp.zeros_like(acc_ref)

    # ---- every n-tile: accumulate sum_n relu(alpha + s_n - s_p) over negs ----
    s_n = scores_n_ref[...]                              # (BB, TN) f32 (streamed)
    neg_n = target_n_ref[...] == 0                       # (BB, TN) bool
    # Fold alpha + mask at 2-D cost; sentinel keeps non-negatives at hinge == 0.
    s_n_eff = jnp.where(neg_n, s_n + alpha, _NEG_SENTINEL)            # (BB, TN)
    hinge = jnp.maximum(s_n_eff[:, :, None] - scores_p_ref[...][:, None, :], 0.0)
    acc_ref[...] += jnp.sum(hinge, axis=1)               # sublane-axis reduce -> (BB, L)

    # ---- once per batch block (last n-tile): scalar partial loss ----
    @pl.when(ni == pl.num_programs(1) - 1)
    def _finalize():
        total = jnp.sum(lmat_ref[...] * acc_ref[...])
        loss_ref[...] = jnp.zeros_like(loss_ref) + total


def _sample_negative_scores(scores, target, num_trials, key):
    """Uniform-with-replacement sampling of negative-label scores per row
    (same distribution as torch.multinomial over uniform negative weights)."""
    b, _ = scores.shape
    is_neg = target == 0.0
    neg_logits = jnp.where(is_neg, 0.0, -jnp.inf)                     # (B, L)
    samples = jax.random.categorical(
        key, neg_logits[:, None, :], axis=-1, shape=(b, num_trials))  # (B, K)
    samp = jnp.take_along_axis(scores, samples, axis=1)               # (B, K)
    # Guard rows with zero negatives: their samples are meaningless; force them
    # to a value that can never violate the margin (row is masked out anyway).
    has_neg = jnp.sum(is_neg.astype(jnp.float32), axis=1, keepdims=True) > 0.0
    return jnp.where(has_neg, samp, _NEG_SENTINEL)


def _round_up(x, m):
    return ((x + m - 1) // m) * m


def _vmem_budget_bytes():
    """~80% of physical VMEM (v7x: ~51 MiB of 64; v5e/v6e: ~102 MiB of 128)."""
    cap = 128 * 1024 * 1024
    try:
        info = pltpu.get_tpu_info()
        cap = int(getattr(info, "vmem_capacity_bytes", cap) or cap)
    except Exception:
        pass
    return max(32 * 1024 * 1024, min(int(0.8 * cap), cap - (4 << 20)))


def _pick_batch_block(b):
    """Batch block for the leading 'parallel' grid axis. Blocks must be a
    multiple of 8 sublanes (or the full batch)."""
    if b >= 16 and b % 8 == 0:
        return 8
    return b


def _pick_k_chunk(k, bb, l, budget):
    """K chunk for the rank computation; the (BB, KC, L) transient must fit
    comfortably inside the VMEM budget."""
    kc = min(_round_up(k, 8), 256)
    while kc > 8 and 8 * bb * kc * l > budget // 3:   # 2x headroom * 4 B/elem
        kc //= 2
    kc = max(8, (kc // 8) * 8)
    k_pad = _round_up(k, kc)
    return kc, k_pad


def _step_vmem_bytes(bb, l, tn, kc, n_kc):
    resident = 2 * (4 * bb * l + 4 * bb * l + 4 * n_kc * bb * kc + 4 * n_kc * kc)
    streamed = 2 * (4 * bb * tn + 4 * bb * tn)        # double-buffered n-tiles
    scratch = 2 * 4 * bb * l                          # lmat + acc
    hinge = 8 * bb * tn * l                           # (BB, TN, L) f32, 2x headroom
    init = 8 * bb * kc * l                            # (BB, KC, L) f32, 2x headroom
    return resident + streamed + scratch + hinge + init + 8 * 1024


def _pick_n_tile(l, bb, kc, n_kc, budget, max_n_tile):
    cands = [c for c in (512, 256, 128) if c <= l and l % c == 0]
    if max_n_tile is not None:
        cands = [c for c in cands if c <= max_n_tile]
    for tn in cands:
        if _step_vmem_bytes(bb, l, tn, kc, n_kc) <= budget:
            return tn
    if cands:
        return cands[-1]      # smallest aligned tile (may spill, still correct)
    return l                  # tiny / unaligned L: one full tile


def warp_loss(scores, target, *, alpha=0.0, max_num_trials=None, key=None,
              max_n_tile=None):
    scores = scores.astype(jnp.float32)
    target_f = target.astype(jnp.float32)
    b, l = scores.shape
    k = max_num_trials if max_num_trials is not None else l - 1
    if key is None:
        key = jax.random.PRNGKey(0)

    # Precomputed K-length rank-weight table: rw2[j] = H_{floor((L-1)/(j+1))}.
    rank_weights = jnp.cumsum(1.0 / (jnp.arange(l, dtype=jnp.float32) + 1.0))
    j = jnp.arange(k, dtype=jnp.float32)
    rw2 = rank_weights[jnp.floor((l - 1.0) / (j + 1.0)).astype(jnp.int32)]  # (K,)

    samp = _sample_negative_scores(scores, target_f, k, key)                # (B, K)

    budget = _vmem_budget_bytes()
    bb = _pick_batch_block(b)
    n_b = b // bb
    kc, k_pad = _pick_k_chunk(k, bb, l, budget)
    n_kc = k_pad // kc
    tn = _pick_n_tile(l, bb, kc, n_kc, budget, max_n_tile)
    n_tiles = l // tn

    # Pad K to a chunk multiple: padded samples never violate, padded weights 0.
    samp_p = jnp.pad(samp, ((0, 0), (0, k_pad - k)), constant_values=_NEG_SENTINEL)
    rw2_p = jnp.pad(rw2, (0, k_pad - k))
    samp3 = samp_p.reshape(b, n_kc, kc).transpose(1, 0, 2)     # (n_kc, B, KC)
    rw3 = rw2_p.reshape(n_kc, 1, kc)                           # (n_kc, 1, KC)

    target_i = (target_f != 0.0).astype(jnp.int32)             # {0,1} indicator

    kernel = functools.partial(_warp_kernel, alpha=float(alpha))
    out = pl.pallas_call(
        kernel,
        out_shape=jax.ShapeDtypeStruct((n_b, 8, 128), jnp.float32),
        grid_spec=pltpu.PrefetchScalarGridSpec(
            num_scalar_prefetch=0,
            grid=(n_b, n_tiles),
            in_specs=[
                pl.BlockSpec((bb, l), lambda bi, ni: (bi, 0)),       # scores, resident (p axis)
                pl.BlockSpec((bb, tn), lambda bi, ni: (bi, ni)),     # scores, streamed n-tile
                pl.BlockSpec((bb, l), lambda bi, ni: (bi, 0)),       # target, resident
                pl.BlockSpec((bb, tn), lambda bi, ni: (bi, ni)),     # target, streamed n-tile
                pl.BlockSpec((n_kc, bb, kc), lambda bi, ni: (0, bi, 0)),  # sampled neg scores
                pl.BlockSpec((n_kc, 1, kc), lambda bi, ni: (0, 0, 0)),    # rw2 rank-weight table
            ],
            out_specs=pl.BlockSpec((1, 8, 128), lambda bi, ni: (bi, 0, 0)),
            scratch_shapes=[
                pltpu.VMEM((bb, l), jnp.float32),   # L-matrix (rank weight per positive)
                pltpu.VMEM((bb, l), jnp.float32),   # hinge accumulator over n-tiles
            ],
        ),
        compiler_params=pltpu.CompilerParams(
            dimension_semantics=("parallel", "arbitrary"),
            vmem_limit_bytes=int(budget),
        ),
    )(scores, scores, target_i, target_i, samp3, rw3)
    # Per-batch-block partial losses live at [:, 0, 0] of each (8, 128) tile.
    return jnp.sum(out[:, 0, 0])


def warp_loss_ref(scores, target, *, alpha=0.0, max_num_trials=None, key=None):
    """Pure-JAX reference using the original rejection/argmax formulation and
    the same sampled negatives (independent check of the rw2-table rewrite)."""
    scores = scores.astype(jnp.float32)
    target = target.astype(jnp.float32)
    b, l = scores.shape
    k = max_num_trials if max_num_trials is not None else l - 1
    if key is None:
        key = jax.random.PRNGKey(0)
    samp = _sample_negative_scores(scores, target, k, key)
    rw = jnp.cumsum(1.0 / (jnp.arange(l, dtype=jnp.float32) + 1.0))

    pos = (target != 0.0).astype(jnp.float32)
    neg = (target == 0.0).astype(jnp.float32)
    npos = pos.sum(1, keepdims=True)
    valid = ((npos > 0) & (npos < l)).astype(jnp.float32)
    margin = (alpha + samp[:, None, :] - scores[:, :, None]) > 0.0   # (B, L, K)
    idx = jnp.arange(k, 0, -1, dtype=jnp.float32)
    max_w = jnp.max(margin.astype(jnp.float32) * idx, axis=2)
    violated = (max_w > 0.0).astype(jnp.float32)
    rejection = k - max_w
    rank_idx = jnp.floor((l - 1.0) / (rejection + 1.0)).astype(jnp.int32)
    label_rank = rw[rank_idx]
    l_mat = label_rank * violated * pos * valid
    hinge = jnp.maximum(alpha + scores[:, None, :] - scores[:, :, None], 0.0)
    return jnp.sum(l_mat[:, :, None] * hinge * neg[:, None, :])


if __name__ == "__main__":
    # Test 1: tiny unaligned shape (single n-tile, single K chunk).
    k_scores, k_target, k_sample = jax.random.split(jax.random.PRNGKey(0), 3)
    B, L = 4, 16
    scores = jax.random.normal(k_scores, (B, L), dtype=jnp.float32)
    target = (jax.random.uniform(k_target, (B, L)) < 0.4).astype(jnp.float32)
    loss = jax.block_until_ready(warp_loss(scores, target, alpha=0.0, key=k_sample))
    ref = warp_loss_ref(scores, target, alpha=0.0, key=k_sample)
    assert jnp.allclose(loss, ref, rtol=1e-5, atol=1e-5), (float(loss), float(ref))

    # Test 2: lane-aligned shape exercising the multi-step tiled n-grid path.
    k2s, k2t, k2m = jax.random.split(jax.random.PRNGKey(0), 3)
    B2, L2 = 8, 256
    scores2 = jax.random.normal(k2s, (B2, L2), dtype=jnp.float32)
    target2 = (jax.random.uniform(k2t, (B2, L2)) < 0.1).astype(jnp.float32)
    loss2 = jax.block_until_ready(
        warp_loss(scores2, target2, alpha=0.1, key=k2m, max_n_tile=128))
    ref2 = warp_loss_ref(scores2, target2, alpha=0.1, key=k2m)
    assert jnp.allclose(loss2, ref2, rtol=1e-4, atol=1e-4), (float(loss2), float(ref2))

    # Test 3: batch-parallel grid axis (2 batch blocks of 8) + chunked K (2 chunks).
    k3s, k3t, k3m = jax.random.split(jax.random.PRNGKey(2), 3)
    B3, L3 = 16, 512
    scores3 = jax.random.normal(k3s, (B3, L3), dtype=jnp.float32)
    target3 = (jax.random.uniform(k3t, (B3, L3)) < 0.2).astype(jnp.float32)
    loss3 = jax.block_until_ready(warp_loss(scores3, target3, alpha=0.05, key=k3m))
    ref3 = warp_loss_ref(scores3, target3, alpha=0.05, key=k3m)
    assert jnp.allclose(loss3, ref3, rtol=5e-4, atol=1e-2), (float(loss3), float(ref3))

    print("KERNEL_OK")
</pallas_src>

<mosaic_0001>
module attributes {stable_mosaic.version = 11 : i64} {
  func.func @_warp_kernel(%arg0: i32, %arg1: i32, %arg2: memref<4x16xf32, #tpu.memory_space<vmem>>, %arg3: memref<4x16xf32, #tpu.memory_space<vmem>>, %arg4: memref<4x16xi32, #tpu.memory_space<vmem>>, %arg5: memref<4x16xi32, #tpu.memory_space<vmem>>, %arg6: memref<1x4x16xf32, #tpu.memory_space<vmem>>, %arg7: memref<1x1x16xf32, #tpu.memory_space<vmem>>, %arg8: memref<1x8x128xf32, #tpu.memory_space<vmem>>, %arg9: memref<4x16xf32, #tpu.memory_space<vmem>>, %arg10: memref<4x16xf32, #tpu.memory_space<vmem>>) attributes {dimension_semantics = [#tpu.dimension_semantics<parallel>, #tpu.dimension_semantics<arbitrary>], iteration_bounds = array<i64: 1, 1>, scalar_prefetch = 0 : i64, scratch_operands = 2 : i64, tpu.core_type = #tpu.core_type<tc>, window_params = [{transform_indices = @transform_0, window_bounds = array<i64: 4, 16>}, {transform_indices = @transform_1, window_bounds = array<i64: 4, 16>}, {transform_indices = @transform_2, window_bounds = array<i64: 4, 16>}, {transform_indices = @transform_3, window_bounds = array<i64: 4, 16>}, {transform_indices = @transform_4, window_bounds = array<i64: 1, 4, 16>}, {pipeline_mode = #tpu.pipeline_mode<synchronous>, transform_indices = @transform_5, window_bounds = array<i64: 1, 1, 16>}, {transform_indices = @transform_6, window_bounds = array<i64: 1, 8, 128>}]} {
    %c0_i32 = arith.constant 0 : i32
    %0 = arith.cmpi eq, %arg1, %c0_i32 : i32
    %1 = arith.extui %0 : i1 to i32
    %c0_i32_0 = arith.constant 0 : i32
    %2 = arith.cmpi ne, %1, %c0_i32_0 : i32
    scf.if %2 {
      %c0_16 = arith.constant 0 : index
      %c0_17 = arith.constant 0 : index
      %26 = vector.load %arg2[%c0_16, %c0_17] : memref<4x16xf32, #tpu.memory_space<vmem>>, vector<4x16xf32>
      %c0_18 = arith.constant 0 : index
      %c0_19 = arith.constant 0 : index
      %27 = vector.load %arg4[%c0_18, %c0_19] : memref<4x16xi32, #tpu.memory_space<vmem>>, vector<4x16xi32>
      %c0_i32_20 = arith.constant 0 : i32
      %28 = vector.broadcast %c0_i32_20 : i32 to vector<4x16xi32>
      %29 = arith.cmpi sgt, %27, %28 : vector<4x16xi32>
      %30 = arith.extui %29 : vector<4x16xi1> to vector<4x16xi32>
      %31 = arith.sitofp %30 : vector<4x16xi32> to vector<4x16xf32>
      %cst_21 = arith.constant dense<0.000000e+00> : vector<4xf32>
      %32 = vector.multi_reduction <add>, %31, %cst_21 [1] : vector<4x16xf32> to vector<4xf32>
      %33 = vector.shape_cast %32 : vector<4xf32> to vector<4x1xf32>
      %cst_22 = arith.constant 0.000000e+00 : f32
      %34 = vector.broadcast %cst_22 : f32 to vector<4x1xf32>
      %35 = arith.cmpf ogt, %33, %34 : vector<4x1xf32>
      %cst_23 = arith.constant 1.600000e+01 : f32
      %36 = vector.broadcast %cst_23 : f32 to vector<4x1xf32>
      %37 = arith.cmpf olt, %33, %36 : vector<4x1xf32>
      %38 = arith.andi %35, %37 : vector<4x1xi1>
      %cst_24 = arith.constant 0.000000e+00 : f32
      %39 = vector.broadcast %cst_24 : f32 to vector<4x16xf32>
      %c0_i32_25 = arith.constant 0 : i32
      %40 = arith.index_cast %c0_i32_25 : i32 to index
      %c0_26 = arith.constant 0 : index
      %c0_27 = arith.constant 0 : index
      %41 = vector.load %arg6[%40, %c0_26, %c0_27] : memref<1x4x16xf32, #tpu.memory_space<vmem>>, vector<1x4x16xf32>
      %42 = vector.shape_cast %41 : vector<1x4x16xf32> to vector<4x16xf32>
      %cst_28 = arith.constant 0.000000e+00 : f32
      %43 = vector.broadcast %cst_28 : f32 to vector<4x16xf32>
      %44 = arith.addf %42, %43 : vector<4x16xf32>
      %45 = arith.index_cast %c0_i32_25 : i32 to index
      %c0_29 = arith.constant 0 : index
      %c0_30 = arith.constant 0 : index
      %46 = vector.load %arg7[%45, %c0_29, %c0_30] : memref<1x1x16xf32, #tpu.memory_space<vmem>>, vector<1x1x16xf32>
      %47 = vector.shape_cast %46 : vector<1x1x16xf32> to vector<1x16xf32>
      %48 = vector.shape_cast %44 : vector<4x16xf32> to vector<4x16x1xf32>
      %49 = vector.shape_cast %26 : vector<4x16xf32> to vector<4x1x16xf32>
      %50 = vector.broadcast %48 : vector<4x16x1xf32> to vector<4x16x16xf32>
      %51 = vector.broadcast %49 : vector<4x1x16xf32> to vector<4x16x16xf32>
      %52 = arith.cmpf ogt, %50, %51 : vector<4x16x16xf32>
      %53 = vector.shape_cast %47 : vector<1x16xf32> to vector<1x16x1xf32>
      %cst_31 = arith.constant 0.000000e+00 : f32
      %54 = vector.shape_cast %53 : vector<1x16x1xf32> to vector<1x16x1xf32>
      %55 = vector.broadcast %54 : vector<1x16x1xf32> to vector<4x16x16xf32>
      %56 = vector.broadcast %cst_31 : f32 to vector<4x16x16xf32>
      %57 = arith.select %52, %55, %56 : vector<4x16x16xi1>, vector<4x16x16xf32>
      %cst_32 = arith.constant dense<0xFF800000> : vector<4x16xf32>
      %58 = vector.multi_reduction <maximumf>, %57, %cst_32 [1] : vector<4x16x16xf32> to vector<4x16xf32>
      %59 = arith.maximumf %39, %58 : vector<4x16xf32>
      %c1_i32 = arith.constant 1 : i32
      %60 = vector.broadcast %38 : vector<4x1xi1> to vector<4x16xi1>
      %61 = arith.andi %29, %60 : vector<4x16xi1>
      %cst_33 = arith.constant 0.000000e+00 : f32
      %62 = vector.broadcast %cst_33 : f32 to vector<4x16xf32>
      %63 = arith.select %61, %59, %62 : vector<4x16xi1>, vector<4x16xf32>
      %c0_34 = arith.constant 0 : index
      %c0_35 = arith.constant 0 : index
      %64 = vector.load %arg9[%c0_34, %c0_35] : memref<4x16xf32, #tpu.memory_space<vmem>>, vector<4x16xf32>
      tpu.vector_store %arg9[%c0_34, %c0_35], %63 {strides = array<i32>} : memref<4x16xf32, #tpu.memory_space<vmem>>, vector<4x16xf32>,
      %cst_36 = arith.constant 0.000000e+00 : f32
      %65 = vector.broadcast %cst_36 : f32 to vector<4x16xf32>
      %c0_37 = arith.constant 0 : index
      %c0_38 = arith.constant 0 : index
      %66 = vector.load %arg10[%c0_37, %c0_38] : memref<4x16xf32, #tpu.memory_space<vmem>>, vector<4x16xf32>
      tpu.vector_store %arg10[%c0_37, %c0_38], %65 {strides = array<i32>} : memref<4x16xf32, #tpu.memory_space<vmem>>, vector<4x16xf32>,
    } else {
    }
    %c0 = arith.constant 0 : index
    %c0_1 = arith.constant 0 : index
    %3 = vector.load %arg3[%c0, %c0_1] : memref<4x16xf32, #tpu.memory_space<vmem>>, vector<4x16xf32>
    %c0_2 = arith.constant 0 : index
    %c0_3 = arith.constant 0 : index
    %4 = vector.load %arg5[%c0_2, %c0_3] : memref<4x16xi32, #tpu.memory_space<vmem>>, vector<4x16xi32>
    %c0_i32_4 = arith.constant 0 : i32
    %5 = vector.broadcast %c0_i32_4 : i32 to vector<4x16xi32>
    %6 = arith.cmpi eq, %4, %5 : vector<4x16xi32>
    %cst = arith.constant 0.000000e+00 : f32
    %7 = vector.broadcast %cst : f32 to vector<4x16xf32>
    %8 = arith.addf %3, %7 : vector<4x16xf32>
    %cst_5 = arith.constant -1.000000e+30 : f32
    %9 = vector.broadcast %cst_5 : f32 to vector<4x16xf32>
    %10 = arith.select %6, %8, %9 : vector<4x16xi1>, vector<4x16xf32>
    %11 = vector.shape_cast %10 : vector<4x16xf32> to vector<4x16x1xf32>
    %c0_6 = arith.constant 0 : index
    %c0_7 = arith.constant 0 : index
    %12 = vector.load %arg2[%c0_6, %c0_7] : memref<4x16xf32, #tpu.memory_space<vmem>>, vector<4x16xf32>
    %13 = vector.shape_cast %12 : vector<4x16xf32> to vector<4x1x16xf32>
    %14 = vector.broadcast %11 : vector<4x16x1xf32> to vector<4x16x16xf32>
    %15 = vector.broadcast %13 : vector<4x1x16xf32> to vector<4x16x16xf32>
    %16 = arith.subf %14, %15 : vector<4x16x16xf32>
    %cst_8 = arith.constant 0.000000e+00 : f32
    %17 = vector.broadcast %cst_8 : f32 to vector<4x16x16xf32>
    %18 = arith.maximumf %16, %17 : vector<4x16x16xf32>
    %c0_9 = arith.constant 0 : index
    %c0_10 = arith.constant 0 : index
    %19 = vector.load %arg10[%c0_9, %c0_10] : memref<4x16xf32, #tpu.memory_space<vmem>>, vector<4x16xf32>
    %cst_11 = arith.constant dense<0.000000e+00> : vector<4x16xf32>
    %20 = vector.multi_reduction <add>, %18, %cst_11 [1] : vector<4x16x16xf32> to vector<4x16xf32>
    %21 = arith.addf %19, %20 : vector<4x16xf32>
    %c0_12 = arith.constant 0 : index
    %c0_13 = arith.constant 0 : index
    %22 = vector.load %arg10[%c0_12, %c0_13] : memref<4x16xf32, #tpu.memory_space<vmem>>, vector<4x16xf32>
    tpu.vector_store %arg10[%c0_12, %c0_13], %21 {strides = array<i32>} : memref<4x16xf32, #tpu.memory_space<vmem>>, vector<4x16xf32>,
    %c0_i32_14 = arith.constant 0 : i32
    %23 = arith.cmpi eq, %arg1, %c0_i32_14 : i32
    %24 = arith.extui %23 : i1 to i32
    %c0_i32_15 = arith.constant 0 : i32
    %25 = arith.cmpi ne, %24, %c0_i32_15 : i32
    scf.if %25 {
      %c0_16 = arith.constant 0 : index
      %c0_17 = arith.constant 0 : index
      %26 = vector.load %arg9[%c0_16, %c0_17] : memref<4x16xf32, #tpu.memory_space<vmem>>, vector<4x16xf32>
      %c0_18 = arith.constant 0 : index
      %c0_19 = arith.constant 0 : index
      %27 = vector.load %arg10[%c0_18, %c0_19] : memref<4x16xf32, #tpu.memory_space<vmem>>, vector<4x16xf32>
      %28 = arith.mulf %26, %27 : vector<4x16xf32>
      %29 = vector.shape_cast %28 : vector<4x16xf32> to vector<1x4x16xf32>
      %cst_20 = arith.constant dense<0.000000e+00> : vector<1xf32>
      %30 = vector.multi_reduction <add>, %29, %cst_20 [1, 2] : vector<1x4x16xf32> to vector<1xf32>
      %31 = vector.shape_cast %30 : vector<1xf32> to vector<1x1x1xf32>
      %32 = vector.extract %31[0, 0, 0] : f32 from vector<1x1x1xf32>
      %cst_21 = arith.constant 0.000000e+00 : f32
      %33 = vector.broadcast %cst_21 : f32 to vector<1x8x128xf32>
      %34 = vector.broadcast %32 : f32 to vector<1x8x128xf32>
      %35 = arith.addf %33, %34 : vector<1x8x128xf32>
      %c0_22 = arith.constant 0 : index
      %c0_23 = arith.constant 0 : index
      %c0_24 = arith.constant 0 : index
      %36 = vector.load %arg8[%c0_22, %c0_23, %c0_24] : memref<1x8x128xf32, #tpu.memory_space<vmem>>, vector<1x8x128xf32>
      tpu.vector_store %arg8[%c0_22, %c0_23, %c0_24], %35 {strides = array<i32>} : memref<1x8x128xf32, #tpu.memory_space<vmem>>, vector<1x8x128xf32>,
    } else {
    }
    return
  }
  func.func @transform_0(%arg0: i32, %arg1: i32) -> (i32, i32) {
    %c0_i32 = arith.constant 0 : i32
    %c0_i32_0 = arith.constant 0 : i32
    return %arg0, %c0_i32 : i32, i32
  }
  func.func @transform_1(%arg0: i32, %arg1: i32) -> (i32, i32) {
    %c0_i32 = arith.constant 0 : i32
    return %arg0, %arg1 : i32, i32
  }
  func.func @transform_2(%arg0: i32, %arg1: i32) -> (i32, i32) {
    %c0_i32 = arith.constant 0 : i32
    %c0_i32_0 = arith.constant 0 : i32
    return %arg0, %c0_i32 : i32, i32
  }
  func.func @transform_3(%arg0: i32, %arg1: i32) -> (i32, i32) {
    %c0_i32 = arith.constant 0 : i32
    return %arg0, %arg1 : i32, i32
  }
  func.func @transform_4(%arg0: i32, %arg1: i32) -> (i32, i32, i32) {
    %c0_i32 = arith.constant 0 : i32
    %c0_i32_0 = arith.constant 0 : i32
    %c0_i32_1 = arith.constant 0 : i32
    return %c0_i32, %arg0, %c0_i32_0 : i32, i32, i32
  }
  func.func @transform_5(%arg0: i32, %arg1: i32) -> (i32, i32, i32) {
    %c0_i32 = arith.constant 0 : i32
    %c0_i32_0 = arith.constant 0 : i32
    %c0_i32_1 = arith.constant 0 : i32
    %c0_i32_2 = arith.constant 0 : i32
    return %c0_i32, %c0_i32_0, %c0_i32_1 : i32, i32, i32
  }
  func.func @transform_6(%arg0: i32, %arg1: i32) -> (i32, i32, i32) {
    %c0_i32 = arith.constant 0 : i32
    %c0_i32_0 = arith.constant 0 : i32
    %c0_i32_1 = arith.constant 0 : i32
    return %arg0, %c0_i32, %c0_i32_0 : i32, i32, i32
  }
}

</mosaic_0001>

<llo_original>
// kernel: tpu_custom_call.1
$region0: #{tpu_custom_call.1}
  #allocation0 [shape = 'u32[]', space=smem, size = 0x4, offset = 0x4, fixed_abs, tag = 'smem constant byte address 0x4 - core index']
  #allocation1 [shape = 'u32[144,128]{1,0:T(1,128)}', space=vmem, size = 0x12000, scoped, tag = 'internal scratch']
  #allocation2 [shape = 'f32[4,16]{1,0:T(4,128)}', space=vmem, size = 0x800, scoped, tag = 'scratch operand']
  #allocation3 [shape = 'f32[4,16]{1,0:T(4,128)}', space=vmem, size = 0x800, scoped, tag = 'scratch operand']
  %s0 = inlined_call_operand.hbm [shape: f32[4,16], index: 0, kind: input, shape index: {}]
  %s1 = inlined_call_operand.hbm [shape: f32[4,16], index: 1, kind: input, shape index: {}]
  %s2 = inlined_call_operand.hbm [shape: s32[4,16], index: 2, kind: input, shape index: {}]
  %s3 = inlined_call_operand.vmem [shape: s32[4,16], index: 3, kind: input, shape index: {}]
  %s4 = inlined_call_operand.hbm [shape: f32[1,4,16], index: 4, kind: input, shape index: {}]
  %s5 = inlined_call_operand.vmem [shape: f32[1,1,16], index: 5, kind: input, shape index: {}]
  %s6 = inlined_call_operand.hbm [shape: f32[1,8,128], index: 6, kind: output, shape index: {}]
  %s7 = sld [smem:[#allocation0]]
  $region58: #{tpu_custom_call.1} parent=0
    _
  %s9 = ssub.s32 1, %s7
  %s10 = scalar_select 0, %s9, %s7
  $region1: #{tpu_custom_call.1} parent=0
    #allocation4 [shape = 'u8[2048]{0}', space=vmem, size = 0x800, scoped, tag = 'input window, operand 0, single buffered']
    #allocation5 [shape = 's32[1]{0}', space=sflag, size = 0x4, scoped, tag = 'scoped memory for tpu_custom_call.1']
    #allocation6 [shape = 's32[1]{0}', space=sflag, size = 0x4, scoped, tag = 'scoped memory for tpu_custom_call.1']
    #allocation7 [shape = 'u8[2048]{0}', space=vmem, size = 0x800, scoped, tag = 'input window, operand 1, single buffered']
    #allocation8 [shape = 's32[1]{0}', space=sflag, size = 0x4, scoped, tag = 'scoped memory for tpu_custom_call.1']
    #allocation9 [shape = 'u8[2048]{0}', space=vmem, size = 0x800, scoped, tag = 'input window, operand 2, single buffered']
    #allocation10 [shape = 'u8[2048]{0}', space=vmem, size = 0x800, scoped, tag = 'input window, operand 4, single buffered']
    #allocation11 [shape = 's32[1]{0}', space=sflag, size = 0x4, scoped, tag = 'scoped memory for tpu_custom_call.1']
    #allocation12 [shape = 'u8[4096]{0}', space=vmem, size = 0x1000, scoped, tag = 'output window, operand 0, single buffered']
    %11 = vsyncpa [#allocation5], 0
    %12 = vsyncpa [#allocation8], 0
    %13 = vsyncpa [#allocation11], 0
    %14 = vsyncpa [#allocation6], 0
    // Predicated region
    $region2: #{tpu_custom_call.1} parent=1 // pred_check
      _
    $region3: #{tpu_custom_call.1} parent=1 // pred_check_branch
      %16 = sbr.rel (0) target = $region5
    $region4: #{tpu_custom_call.1} parent=1 // pred_region
      %s18 = ssub.s32 64, 64
      %19 = vsyncadd [#allocation5], %s18
      %s21 = sshll.u32 [#allocation4], 4
      %s22 = int_to_ptr.vmem [resolvable:$true] %s21
      %24 = dma.hbm_to_vmem [thread:$0]  %s0, 64, %s22, [#allocation5]
    $region5: #{tpu_custom_call.1} parent=1 // pred_fallthru
      _
    // Predicated region
    $region6: #{tpu_custom_call.1} parent=1 // pred_check
      _
    $region7: #{tpu_custom_call.1} parent=1 // pred_check_branch
      %26 = sbr.rel (0) target = $region9
    $region8: #{tpu_custom_call.1} parent=1 // pred_region
      %s28 = ssub.s32 64, 64
      %29 = vsyncadd [#allocation8], %s28
      %s31 = sshll.u32 [#allocation7], 4
      %s32 = int_to_ptr.vmem [resolvable:$true] %s31
      %34 = dma.hbm_to_vmem [thread:$0]  %s1, 64, %s32, [#allocation8]
    $region9: #{tpu_custom_call.1} parent=1 // pred_fallthru
      _
    // Predicated region
    $region10: #{tpu_custom_call.1} parent=1 // pred_check
      _
    $region11: #{tpu_custom_call.1} parent=1 // pred_check_branch
      %36 = sbr.rel (0) target = $region13
    $region12: #{tpu_custom_call.1} parent=1 // pred_region
      %s38 = ssub.s32 64, 64
      %39 = vsyncadd [#allocation8], %s38
      %s41 = sshll.u32 [#allocation9], 4
      %s42 = int_to_ptr.vmem [resolvable:$true] %s41
      %44 = dma.hbm_to_vmem [thread:$0]  %s2, 64, %s42, [#allocation8]
    $region13: #{tpu_custom_call.1} parent=1 // pred_fallthru
      _
    // Predicated region
    $region14: #{tpu_custom_call.1} parent=1 // pred_check
      _
    $region15: #{tpu_custom_call.1} parent=1 // pred_check_branch
      %46 = sbr.rel (0) target = $region17
    $region16: #{tpu_custom_call.1} parent=1 // pred_region
      _
    $region17: #{tpu_custom_call.1} parent=1 // pred_fallthru
      _
    // Predicated region
    $region18: #{tpu_custom_call.1} parent=1 // pred_check
      _
    $region19: #{tpu_custom_call.1} parent=1 // pred_check_branch
      %48 = sbr.rel (0) target = $region21
    $region20: #{tpu_custom_call.1} parent=1 // pred_region
      %s50 = ssub.s32 64, 64
      %51 = vsyncadd [#allocation11], %s50
      %s53 = sshll.u32 [#allocation10], 4
      %s54 = int_to_ptr.vmem [resolvable:$true] %s53
      %56 = dma.hbm_to_vmem [thread:$0]  %s4, 64, %s54, [#allocation11]
    $region21: #{tpu_custom_call.1} parent=1 // pred_fallthru
      _
    // Predicated region
    $region22: #{tpu_custom_call.1} parent=1 // pred_check
      _
    $region23: #{tpu_custom_call.1} parent=1 // pred_check_branch
      %58 = sbr.rel (0) target = $region25
    $region24: #{tpu_custom_call.1} parent=1 // pred_region
      _
    $region25: #{tpu_custom_call.1} parent=1 // pred_fallthru
      _
    // Predicated region
    $region26: #{tpu_custom_call.1} parent=1 // pred_check
      _
    $region27: #{tpu_custom_call.1} parent=1 // pred_check_branch
      %60 = sbr.rel (0) target = $region29
    $region28: #{tpu_custom_call.1} parent=1 // pred_region
      %61 = dma.done [#allocation5], 64
    $region29: #{tpu_custom_call.1} parent=1 // pred_fallthru
      _
    // Predicated region
    $region30: #{tpu_custom_call.1} parent=1 // pred_check
      _
    $region31: #{tpu_custom_call.1} parent=1 // pred_check_branch
      %63 = sbr.rel (0) target = $region33
    $region32: #{tpu_custom_call.1} parent=1 // pred_region
      %64 = dma.done [#allocation8], 64
    $region33: #{tpu_custom_call.1} parent=1 // pred_fallthru
      _
    // Predicated region
    $region34: #{tpu_custom_call.1} parent=1 // pred_check
      _
    $region35: #{tpu_custom_call.1} parent=1 // pred_check_branch
      %66 = sbr.rel (0) target = $region37
    $region36: #{tpu_custom_call.1} parent=1 // pred_region
      %67 = dma.done [#allocation8], 64
    $region37: #{tpu_custom_call.1} parent=1 // pred_fallthru
      _
    // Predicated region
    $region38: #{tpu_custom_call.1} parent=1 // pred_check
      _
    $region39: #{tpu_custom_call.1} parent=1 // pred_check_branch
      %69 = sbr.rel (0) target = $region41
    $region40: #{tpu_custom_call.1} parent=1 // pred_region
      %70 = dma.done [#allocation11], 64
    $region41: #{tpu_custom_call.1} parent=1 // pred_fallthru
      _
    %p71 = scmp.eq.s32.totalorder 0, 0
    // Predicated region
    $region42: #{tpu_custom_call.1} parent=1 // pred_check
      %p72 = pneg %p71
    $region43: #{tpu_custom_call.1} parent=1 // pred_check_branch
      %74 = sbr.rel (%p72) target = $region45
    $region44: #{tpu_custom_call.1} parent=1 // pred_region
      %v75 = vld [vmem:[#allocation4] sm:$0xf]
      %v76 = vld [vmem:[#allocation9] sm:$0xf]
      %vm77 = vcmp.gt.s32.totalorder %v76, 0
      %v78 = vsel %vm77, 1, 0
      %v79 = vcvt.s32.f32 %v78
      %vm80 = vcmask 125952
      %v81 = vsel %vm80, %v79, 0.0
      %82 = vadd.xlane.f32.xlu0 %v81
      %v83 = vpop.xlane.xlu0 %82
      %vm84 = vcmp.gt.f32.partialorder %v83, 0.0
      %vm85 = vcmp.lt.f32.partialorder %v83, 16.0
      %vm86 = vmand %vm84, %vm85
      %v87 = vld [vmem:[#allocation10] sm:$0xf]
      %v88 = vadd.f32 %v87, 0.0
      %v89 = vld [vmem:[%s5] sm:$0x1]
      %v90 = vlaneseq
      %v91 = vshrl.u32 %v90, 7
      %v92 = vsub.s32 0, %v91
      %v93 = vrot.slane %v88, %v92
      %95 = vbcast.lane.b32.xlu0 %v93, 256
      %v96 = vpop.permute.xlu0 %95
      %s98 = sor.u32 256, 8
      %99 = vbcast.lane.b32.xlu0 %v93, %s98
      %v100 = vpop.permute.xlu0 %99
      %v101 = vlaneseq
      %v102 = vshrl.u32 %v101, 7
      %v103 = vsub.s32 1, %v102
      %v104 = vrot.slane %v88, %v103
      %106 = vbcast.lane.b32.xlu0 %v104, 256
      %v107 = vpop.permute.xlu0 %106
      %s109 = sor.u32 256, 8
      %110 = vbcast.lane.b32.xlu0 %v104, %s109
      %v111 = vpop.permute.xlu0 %110
      %v112 = vlaneseq
      %v113 = vshrl.u32 %v112, 7
      %v114 = vsub.s32 2, %v113
      %v115 = vrot.slane %v88, %v114
      %117 = vbcast.lane.b32.xlu0 %v115, 256
      %v118 = vpop.permute.xlu0 %117
      %s120 = sor.u32 256, 8
      %121 = vbcast.lane.b32.xlu0 %v115, %s120
      %v122 = vpop.permute.xlu0 %121
      %v123 = vlaneseq
      %v124 = vshrl.u32 %v123, 7
      %v125 = vsub.s32 3, %v124
      %v126 = vrot.slane %v88, %v125
      %128 = vbcast.lane.b32.xlu0 %v126, 256
      %v129 = vpop.permute.xlu0 %128
      %s131 = sor.u32 256, 8
      %132 = vbcast.lane.b32.xlu0 %v126, %s131
      %v133 = vpop.permute.xlu0 %132
      %v136 = vunpack.c.l.s4 1966171168
      %v137 = vunpack.c.0.s8 %v136
      %v138 = vlaneseq
      %v139 = vshrl.u32 %v138, 7
      %v140 = vsub.s32 %v137, %v139
      %v141 = vrot.slane %v75, %v140
      %v142 = vcombine.high %v141, %v141
      %v144 = vunpack.c.l.s4 1966171168
      %v145 = vunpack.c.0.s8 %v144
      %v146 = vlaneseq
      %v147 = vshrl.u32 %v146, 7
      %v148 = vsub.s32 %v145, %v147
      %v149 = vrot.slane %v141, %v148
      %v151 = vunpack.c.l.s4 1966171168
      %v152 = vunpack.c.0.s8 %v151
      %v153 = vlaneseq
      %v154 = vshrl.u32 %v153, 7
      %v155 = vsub.s32 %v152, %v154
      %v156 = vrot.slane %v142, %v155
      %v157 = vcombine.high %v149, %v149
      %v158 = vcombine.high %v156, %v156
      %v159 = vlaneseq
      %v160 = vshrl.u32 %v159, 7
      %v161 = vsub.s32 0, %v160
      %v162 = vrot.slane %v149, %v161
      %v163 = vlaneseq
      %v164 = vshrl.u32 %v163, 7
      %v165 = vsub.s32 0, %v164
      %v166 = vrot.slane %v156, %v165
      %v167 = vlaneseq
      %v168 = vshrl.u32 %v167, 7
      %v169 = vsub.s32 0, %v168
      %v170 = vrot.slane %v157, %v169
      %v171 = vlaneseq
      %v172 = vshrl.u32 %v171, 7
      %v173 = vsub.s32 0, %v172
      %v174 = vrot.slane %v158, %v173
      %vm179 = vcmp.gt.f32.partialorder %v96, %v162
      %vm180 = vcmp.gt.f32.partialorder %v100, %v162
      %vm181 = vcmp.gt.f32.partialorder %v107, %v166
      %vm182 = vcmp.gt.f32.partialorder %v111, %v166
      %vm183 = vcmp.gt.f32.partialorder %v118, %v170
      %vm184 = vcmp.gt.f32.partialorder %v122, %v170
      %vm185 = vcmp.gt.f32.partialorder %v129, %v174
      %vm186 = vcmp.gt.f32.partialorder %v133, %v174
      %v187 = vlaneseq
      %v188 = vshrl.u32 %v187, 7
      %v189 = vsub.s32 0, %v188
      %v190 = vrot.slane %v89, %v189
      %192 = vbcast.lane.b32.xlu0 %v190, 256
      %v193 = vpop.permute.xlu0 %192
      %s195 = sor.u32 256, 8
      %196 = vbcast.lane.b32.xlu0 %v190, %s195
      %v197 = vpop.permute.xlu0 %196
      %v198 = vsel %vm179, %v193, 0.0
      %v199 = vsel %vm180, %v197, 0.0
      %v200 = vsel %vm181, %v193, 0.0
      %v201 = vsel %vm182, %v197, 0.0
      %v202 = vsel %vm183, %v193, 0.0
      %v203 = vsel %vm184, %v197, 0.0
      %v204 = vsel %vm185, %v193, 0.0
      %v205 = vsel %vm186, %v197, 0.0
      %vm206 = vcmask 130048
      %v207 = vsel %vm206, %v198, -inf
      %v208 = vsel %vm206, %v199, -inf
      %v209 = vmax.f32 %v207, %v208
      %v210 = vrot.slane %v209, 4
      %v211 = vmax.f32 %v209, %v210
      %v212 = vrot.slane %v211, 2
      %v213 = vmax.f32 %v211, %v212
      %v214 = vrot.slane %v213, 1
      %v215 = vmax.f32 %v213, %v214
      %v216 = vsel %vm206, %v200, -inf
      %v217 = vsel %vm206, %v201, -inf
      %v218 = vmax.f32 %v216, %v217
      %v219 = vrot.slane %v218, 4
      %v220 = vmax.f32 %v218, %v219
      %v221 = vrot.slane %v220, 2
      %v222 = vmax.f32 %v220, %v221
      %v223 = vrot.slane %v222, 1
      %v224 = vmax.f32 %v222, %v223
      %v225 = vsel %vm206, %v202, -inf
      %v226 = vsel %vm206, %v203, -inf
      %v227 = vmax.f32 %v225, %v226
      %v228 = vrot.slane %v227, 4
      %v229 = vmax.f32 %v227, %v228
      %v230 = vrot.slane %v229, 2
      %v231 = vmax.f32 %v229, %v230
      %v232 = vrot.slane %v231, 1
      %v233 = vmax.f32 %v231, %v232
      %v234 = vsel %vm206, %v204, -inf
      %v235 = vsel %vm206, %v205, -inf
      %v236 = vmax.f32 %v234, %v235
      %v237 = vrot.slane %v236, 4
      %v238 = vmax.f32 %v236, %v237
      %v239 = vrot.slane %v238, 2
      %v240 = vmax.f32 %v238, %v239
      %v241 = vrot.slane %v240, 1
      %v242 = vmax.f32 %v240, %v241
      %v243 = vmax.f32 %v215, 0.0
      %v244 = vmax.f32 %v224, 0.0
      %v245 = vmax.f32 %v233, 0.0
      %v246 = vmax.f32 %v242, 0.0
      %v247 = vsel %vm86, 1, 0
      %vm248 = vcmp.eq.s32.totalorder %v247, 1
      %vm249 = vmand %vm77, %vm248
      %vm254 = vcmask 1041409
      %v255 = vsel %vm254, %v244, %v243
      %vm256 = vcmask 1042434
      %v257 = vsel %vm256, %v245, %v255
      %vm258 = vcmask 1043459
      %v259 = vsel %vm258, %v246, %v257
      %v261 = vsel %vm249, %v259, 0.0
      %262 = vst.msk [vmem:[#allocation2] sm:$0xf] %vm80, %v261
      %263 = vst.msk [vmem:[#allocation3] sm:$0xf] %vm80, 0.0
    $region45: #{tpu_custom_call.1} parent=1 // pred_fallthru
      _
    %v264 = vld [vmem:[#allocation7] sm:$0xf]
    %v265 = vld [vmem:[%s3] sm:$0xf]
    %vm266 = vcmp.eq.s32.totalorder %v265, 0
    %v267 = vadd.f32 %v264, 0.0
    %v268 = vsel %vm266, %v267, -1e+30
    %v269 = vlaneseq
    %v270 = vshrl.u32 %v269, 7
    %v271 = vsub.s32 0, %v270
    %v272 = vrot.slane %v268, %v271
    %274 = vbcast.lane.b32.xlu0 %v272, 256
    %v275 = vpop.permute.xlu0 %274
    %s277 = sor.u32 256, 8
    %278 = vbcast.lane.b32.xlu0 %v272, %s277
    %v279 = vpop.permute.xlu0 %278
    %v280 = vlaneseq
    %v281 = vshrl.u32 %v280, 7
    %v282 = vsub.s32 1, %v281
    %v283 = vrot.slane %v268, %v282
    %285 = vbcast.lane.b32.xlu0 %v283, 256
    %v286 = vpop.permute.xlu0 %285
    %s288 = sor.u32 256, 8
    %289 = vbcast.lane.b32.xlu0 %v283, %s288
    %v290 = vpop.permute.xlu0 %289
    %v291 = vlaneseq
    %v292 = vshrl.u32 %v291, 7
    %v293 = vsub.s32 2, %v292
    %v294 = vrot.slane %v268, %v293
    %296 = vbcast.lane.b32.xlu0 %v294, 256
    %v297 = vpop.permute.xlu0 %296
    %s299 = sor.u32 256, 8
    %300 = vbcast.lane.b32.xlu0 %v294, %s299
    %v301 = vpop.permute.xlu0 %300
    %v302 = vlaneseq
    %v303 = vshrl.u32 %v302, 7
    %v304 = vsub.s32 3, %v303
    %v305 = vrot.slane %v268, %v304
    %307 = vbcast.lane.b32.xlu0 %v305, 256
    %v308 = vpop.permute.xlu0 %307
    %s310 = sor.u32 256, 8
    %311 = vbcast.lane.b32.xlu0 %v305, %s310
    %v312 = vpop.permute.xlu0 %311
    %v313 = vld [vmem:[#allocation4] sm:$0xf]
    %v316 = vunpack.c.l.s4 1966171168
    %v317 = vunpack.c.0.s8 %v316
    %v318 = vlaneseq
    %v319 = vshrl.u32 %v318, 7
    %v320 = vsub.s32 %v317, %v319
    %v321 = vrot.slane %v313, %v320
    %v322 = vcombine.high %v321, %v321
    %v324 = vunpack.c.l.s4 1966171168
    %v325 = vunpack.c.0.s8 %v324
    %v326 = vlaneseq
    %v327 = vshrl.u32 %v326, 7
    %v328 = vsub.s32 %v325, %v327
    %v329 = vrot.slane %v321, %v328
    %v331 = vunpack.c.l.s4 1966171168
    %v332 = vunpack.c.0.s8 %v331
    %v333 = vlaneseq
    %v334 = vshrl.u32 %v333, 7
    %v335 = vsub.s32 %v332, %v334
    %v336 = vrot.slane %v322, %v335
    %v337 = vcombine.high %v329, %v329
    %v338 = vcombine.high %v336, %v336
    %v339 = vlaneseq
    %v340 = vshrl.u32 %v339, 7
    %v341 = vsub.s32 0, %v340
    %v342 = vrot.slane %v329, %v341
    %v343 = vlaneseq
    %v344 = vshrl.u32 %v343, 7
    %v345 = vsub.s32 0, %v344
    %v346 = vrot.slane %v336, %v345
    %v347 = vlaneseq
    %v348 = vshrl.u32 %v347, 7
    %v349 = vsub.s32 0, %v348
    %v350 = vrot.slane %v337, %v349
    %v351 = vlaneseq
    %v352 = vshrl.u32 %v351, 7
    %v353 = vsub.s32 0, %v352
    %v354 = vrot.slane %v338, %v353
    %v359 = vsub.f32 %v275, %v342
    %v360 = vsub.f32 %v279, %v342
    %v361 = vsub.f32 %v286, %v346
    %v362 = vsub.f32 %v290, %v346
    %v363 = vsub.f32 %v297, %v350
    %v364 = vsub.f32 %v301, %v350
    %v365 = vsub.f32 %v308, %v354
    %v366 = vsub.f32 %v312, %v354
    %v367 = vmax.f32 %v359, 0.0
    %v368 = vmax.f32 %v360, 0.0
    %v369 = vmax.f32 %v361, 0.0
    %v370 = vmax.f32 %v362, 0.0
    %v371 = vmax.f32 %v363, 0.0
    %v372 = vmax.f32 %v364, 0.0
    %v373 = vmax.f32 %v365, 0.0
    %v374 = vmax.f32 %v366, 0.0
    %v375 = vld [vmem:[#allocation3] sm:$0xf]
    %vm376 = vcmask 130048
    %v377 = vsel %vm376, %v367, 0.0
    %v378 = vsel %vm376, %v368, 0.0
    %v379 = vadd.f32 %v377, %v378
    %v380 = vrot.slane %v379, 4
    %v381 = vadd.f32 %v379, %v380
    %v382 = vrot.slane %v381, 2
    %v383 = vadd.f32 %v381, %v382
    %v384 = vrot.slane %v383, 1
    %v385 = vadd.f32 %v383, %v384
    %v386 = vsel %vm376, %v369, 0.0
    %v387 = vsel %vm376, %v370, 0.0
    %v388 = vadd.f32 %v386, %v387
    %v389 = vrot.slane %v388, 4
    %v390 = vadd.f32 %v388, %v389
    %v391 = vrot.slane %v390, 2
    %v392 = vadd.f32 %v390, %v391
    %v393 = vrot.slane %v392, 1
    %v394 = vadd.f32 %v392, %v393
    %v395 = vsel %vm376, %v371, 0.0
    %v396 = vsel %vm376, %v372, 0.0
    %v397 = vadd.f32 %v395, %v396
    %v398 = vrot.slane %v397, 4
    %v399 = vadd.f32 %v397, %v398
    %v400 = vrot.slane %v399, 2
    %v401 = vadd.f32 %v399, %v400
    %v402 = vrot.slane %v401, 1
    %v403 = vadd.f32 %v401, %v402
    %v404 = vsel %vm376, %v373, 0.0
    %v405 = vsel %vm376, %v374, 0.0
    %v406 = vadd.f32 %v404, %v405
    %v407 = vrot.slane %v406, 4
    %v408 = vadd.f32 %v406, %v407
    %v409 = vrot.slane %v408, 2
    %v410 = vadd.f32 %v408, %v409
    %v411 = vrot.slane %v410, 1
    %v412 = vadd.f32 %v410, %v411
    %vm417 = vcmask 1041409
    %v418 = vsel %vm417, %v394, %v385
    %vm419 = vcmask 1042434
    %v420 = vsel %vm419, %v403, %v418
    %vm421 = vcmask 1043459
    %v422 = vsel %vm421, %v412, %v420
    %v424 = vadd.f32 %v375, %v422
    %vm425 = vcmask 125952
    %426 = vst.msk [vmem:[#allocation3] sm:$0xf] %vm425, %v424
    // Predicated region
    $region46: #{tpu_custom_call.1} parent=1 // pred_check
      %p427 = pneg %p71
    $region47: #{tpu_custom_call.1} parent=1 // pred_check_branch
      %429 = sbr.rel (%p427) target = $region49
    $region48: #{tpu_custom_call.1} parent=1 // pred_region
      %v430 = vld [vmem:[#allocation2] sm:$0xf]
      %v431 = vld [vmem:[#allocation3] sm:$0xf]
      %v432 = vmul.f32 %v430, %v431
      %v433 = vsel %vm425, %v432, 0.0
      %434 = vadd.xlane.f32.xlu0 %v433
      %v435 = vpop.xlane.xlu0 %434
      %v436 = vrot.slane %v435, 4
      %v437 = vadd.f32 %v435, %v436
      %v438 = vrot.slane %v437, 2
      %v439 = vadd.f32 %v437, %v438
      %v440 = vrot.slane %v439, 1
      %v441 = vadd.f32 %v439, %v440
      %s442 = vtos %v441
      %v443 = vstv %s442
      %v444 = vadd.f32 %v443, 0.0
      %445 = vst [vmem:[#allocation12] sm:$0xff] %v444
    $region49: #{tpu_custom_call.1} parent=1 // pred_fallthru
      _
    // Predicated region
    $region50: #{tpu_custom_call.1} parent=1 // pred_check
      _
    $region51: #{tpu_custom_call.1} parent=1 // pred_check_branch
      %447 = sbr.rel (0) target = $region53
    $region52: #{tpu_custom_call.1} parent=1 // pred_region
      %s449 = ssub.s32 128, 128
      %450 = vsyncadd [#allocation6], %s449
      %s452 = sshll.u32 [#allocation12], 4
      %s453 = int_to_ptr.vmem [resolvable:$true] %s452
      %455 = dma.vmem_to_hbm [thread:$0]  %s453, 128, %s6, [#allocation6]
    $region53: #{tpu_custom_call.1} parent=1 // pred_fallthru
      _
    // Predicated region
    $region54: #{tpu_custom_call.1} parent=1 // pred_check
      _
    $region55: #{tpu_custom_call.1} parent=1 // pred_check_branch
      %457 = sbr.rel (0) target = $region57
    $region56: #{tpu_custom_call.1} parent=1 // pred_region
      %458 = dma.done [#allocation6], 128
    $region57: #{tpu_custom_call.1} parent=1 // pred_fallthru
      _
    %459 = vsyncpa [#allocation5], 1
    %460 = vsyncpa [#allocation8], 1
    %461 = vsyncpa [#allocation11], 1
    %462 = vsyncpa [#allocation6], 1

</llo_original>
